<compile_context>
chip_gen: v5e
topology: v5e:2x2
jax: 0.10.0
libtpu: 0.0.40
codegen_flags: <defaults>
</compile_context>

<pallas_src>
import math

import jax
import jax.numpy as jnp
from jax.experimental import pallas as pl
from jax.experimental.pallas import tpu as pltpu


# ---------------------------------------------------------------------------
# Kernel
# ---------------------------------------------------------------------------
def resblock_kernel(x_ref, wt_ref, b_ref, xres_ref, o_ref):
    """One (tm, tn) output tile of  y = x + SiLU(x @ W^T + b).

    x_ref:    (tm, Hp)  activation panel, input dtype (full contraction resident)
    wt_ref:   (Hp, tn)  pre-transposed weight panel, compute dtype (bf16/f32)
    b_ref:    (1,  tn)  bias, f32
    xres_ref: (tm, tn)  residual tile of x, input dtype (kept full precision)
    o_ref:    (tm, tn)  output tile, input dtype
    """
    # MXU matmul with f32 accumulation; both operands fed in the weight dtype
    # (bf16 by default -> bf16-native MXU rate, half the weight HBM stream).
    z = jnp.dot(
        x_ref[...].astype(wt_ref.dtype),
        wt_ref[...],
        preferred_element_type=jnp.float32,
    )
    z = z + b_ref[...]                                    # f32 bias add
    # SiLU: exp on the EUP; divide via pl.reciprocal (exact).
    act = z * pl.reciprocal(1.0 + jnp.exp(-z), approx=False)
    o_ref[...] = (xres_ref[...].astype(jnp.float32) + act).astype(o_ref.dtype)


# ---------------------------------------------------------------------------
# Helpers
# ---------------------------------------------------------------------------
def _round_up(x, m):
    return ((x + m - 1) // m) * m


def _vmem_budget_bytes():
    """Per-generation VMEM budget, leaving headroom for compiler scratch."""
    cap = 64 << 20
    try:
        info = pltpu.get_tpu_info()
        cap = int(getattr(info, "vmem_capacity_bytes", cap) or cap)
    except Exception:
        pass
    # 3/4 of physical, capped at 100 MiB (v5e/v6e ~96 MiB, v7x 48 MiB).
    return min(cap * 3 // 4, 100 << 20)


def _pick_tm(M, min_tm):
    """Largest row tile (<=512) that keeps M-padding waste small."""
    cands = [c for c in (512, 256, 128, 64, 32, 16, 8) if c >= min_tm]
    for c in cands:
        if _round_up(M, c) - M <= max(M // 8, min_tm):
            return c
    return cands[-1]


def prepare_resblock_params(w, b, compute_dtype=jnp.bfloat16):
    """One-time parameter prep (do NOT call per step).

    Transposes the PyTorch-layout [out, in] weight to a contiguous W^T
    [in, out], zero-pads the hidden dim to a lane-dense multiple of 128 and
    casts to the MXU compute dtype (bf16 by default).  Bias padded, kept f32.
    """
    H_out, H_in = w.shape
    assert H_out == H_in, "ResBlock Linear must be square"
    Hp = _round_up(H_in, 128)
    wt = jnp.transpose(w).astype(compute_dtype)                  # [in, out]
    if Hp != H_in:
        wt = jnp.zeros((Hp, Hp), compute_dtype).at[:H_in, :H_in].set(wt)
    b_p = jnp.zeros((1, Hp), jnp.float32).at[0, :H_in].set(b.astype(jnp.float32))
    return wt, b_p


# ---------------------------------------------------------------------------
# Wrapper
# ---------------------------------------------------------------------------
def resblock(x2d, wt_p, b_p):
    """ResBlock forward: y = x + SiLU(x @ W^T + b).

    x2d:  (M, H) activations (tokens flattened into the leading axis).
    wt_p: (Hp, Hp) pre-transposed/padded/cast weight from prepare_resblock_params.
    b_p:  (1, Hp)  padded f32 bias from prepare_resblock_params.
    """
    M, H = x2d.shape
    Hp = wt_p.shape[0]
    assert wt_p.shape == (Hp, Hp) and b_p.shape == (1, Hp) and Hp >= H

    dtype = x2d.dtype
    xb = jnp.dtype(dtype).itemsize
    wb = jnp.dtype(wt_p.dtype).itemsize
    ob = xb

    # --- Tile selection (actual dtypes + per-generation VMEM budget) ---------
    budget = _vmem_budget_bytes()
    min_tm = {4: 8, 2: 16, 1: 32}.get(xb, 8)          # sublane minimum per dtype
    tm = _pick_tm(M, min_tm)

    # tn candidates: multiples of 128 dividing Hp (lane-dense, unmasked stores).
    tn_cands = [d for d in range(min(Hp, 2048), 127, -128) if Hp % d == 0]

    def working_set(tm_, tn_):
        # double-buffered: x panel, W^T panel, bias, residual tile, output tile
        return 2 * (tm_ * Hp * xb + Hp * tn_ * wb + 8 * tn_ * 4
                    + tm_ * tn_ * xb + tm_ * tn_ * ob)

    tn = None
    while tn is None:
        for cand in tn_cands:
            if working_set(tm, cand) <= budget * 9 // 10:
                tn = cand
                break
        if tn is None:
            if tm <= min_tm:
                # TODO(synk): for extremely large hidden sizes (K-resident panel
                # no longer fits VMEM) fall back to a K-tiled accumulator kernel.
                tn = tn_cands[-1]
            else:
                tm = max(min_tm, tm // 2)
    Mp = _round_up(M, tm)
    n_i, n_j = Mp // tm, Hp // tn

    # v7x has 2 TensorCores sharded over 'parallel' axes: avoid a 1x1 grid when
    # the out-feature axis can be split while keeping tn >= 256.
    if n_i == 1 and n_j == 1:
        for cand in tn_cands:
            if cand < tn and cand >= 256 and Hp // cand >= 2:
                tn = cand
                n_j = Hp // tn
                break

    # --- Grid ordering: keep the heavier operand resident on the inner axis ---
    x_stream = Mp * Hp * xb                 # one full pass over x (matmul lhs)
    w_stream = Hp * Hp * wb                 # one full pass over W^T
    x_resident = (x_stream + n_i * w_stream) <= (n_j * x_stream + w_stream)

    if x_resident:
        grid = (n_i, n_j)                   # i outer, j inner -> x panel resident
        x_map = lambda i, j: (i, 0)
        w_map = lambda i, j: (0, j)
        b_map = lambda i, j: (0, j)
        r_map = lambda i, j: (i, j)
        o_map = lambda i, j: (i, j)
    else:
        grid = (n_j, n_i)                   # j outer, i inner -> W^T panel resident
        x_map = lambda j, i: (i, 0)
        w_map = lambda j, i: (0, j)
        b_map = lambda j, i: (0, j)
        r_map = lambda j, i: (i, j)
        o_map = lambda j, i: (i, j)

    # --- Pad x only when actually ragged (zero padding is exact for this op) --
    x_p = x2d
    if (Mp, Hp) != (M, H):
        x_p = jnp.zeros((Mp, Hp), dtype).at[:M, :H].set(x2d)

    # --- Advisory cost estimate reflecting the real tiled HBM traffic --------
    bytes_accessed = (
        (1 if x_resident else n_j) * Mp * Hp * xb       # matmul x stream
        + Mp * Hp * xb                                  # residual stream
        + (n_i if x_resident else 1) * Hp * Hp * wb     # weight stream
        + n_i * Hp * 4                                  # bias re-reads
        + Mp * Hp * ob                                  # output write
    )
    cost = pl.CostEstimate(
        flops=2 * Mp * Hp * Hp,
        transcendentals=Mp * Hp,
        bytes_accessed=int(bytes_accessed),
    )

    out_p = pl.pallas_call(
        resblock_kernel,
        out_shape=jax.ShapeDtypeStruct((Mp, Hp), dtype),
        grid_spec=pltpu.PrefetchScalarGridSpec(
            num_scalar_prefetch=0,
            grid=grid,
            in_specs=[
                pl.BlockSpec((tm, Hp), x_map),    # x panel (full contraction)
                pl.BlockSpec((Hp, tn), w_map),    # W^T column panel
                pl.BlockSpec((1, tn), b_map),     # bias tile (f32)
                pl.BlockSpec((tm, tn), r_map),    # residual tile (exact dtype)
            ],
            out_specs=pl.BlockSpec((tm, tn), o_map),
        ),
        compiler_params=pltpu.CompilerParams(
            dimension_semantics=("parallel", "parallel"),
            vmem_limit_bytes=int(budget),
        ),
        cost_estimate=cost,
    )(x_p, wt_p, b_p, x_p)

    if (Mp, Hp) != (M, H):
        return out_p[:M, :H]
    return out_p


def _ref(x2d, w, b):
    z = x2d @ w.T + b
    return x2d + z * jax.nn.sigmoid(z)


if __name__ == "__main__":
    key = jax.random.PRNGKey(0)
    k_x, k_w, k_b, k_x2, k_w2, k_b2 = jax.random.split(key, 6)

    # --- Small shape matching the module spec: batch=2, seq=8, hidden=32 ----
    batch, seq, hidden = 2, 8, 32
    x = jax.random.normal(k_x, (batch, seq, hidden), dtype=jnp.float32)
    x2d = x.reshape(batch * seq, hidden)

    # Module init: weight zero-initialized (torch.nn.init.zeros_),
    # bias uniform(-1/sqrt(H), 1/sqrt(H)) (nn.Linear default).
    bound = 1.0 / math.sqrt(hidden)
    w_zero = jnp.zeros((hidden, hidden), dtype=jnp.float32)       # [out, in]
    b = jax.random.uniform(k_b, (hidden,), jnp.float32, minval=-bound, maxval=bound)

    wt_zero, b_p = prepare_resblock_params(w_zero, b)             # bf16 compute
    out = resblock(x2d, wt_zero, b_p).reshape(batch, seq, hidden)
    jax.block_until_ready(out)
    ref = _ref(x2d, w_zero, b).reshape(batch, seq, hidden)
    assert jnp.allclose(out, ref, atol=1e-5, rtol=1e-5), "mismatch (zero-init W)"

    # Random weight: default bf16-MXU path (loose tol) + f32 path (tight tol).
    w_rand = 0.05 * jax.random.normal(k_w, (hidden, hidden), dtype=jnp.float32)
    ref_r = _ref(x2d, w_rand, b)

    wt_bf, b_bf = prepare_resblock_params(w_rand, b)
    out_bf = resblock(x2d, wt_bf, b_bf)
    jax.block_until_ready(out_bf)
    assert jnp.allclose(out_bf, ref_r, atol=2e-2, rtol=2e-2), "mismatch (bf16 W)"

    wt_f32, b_f32 = prepare_resblock_params(w_rand, b, compute_dtype=jnp.float32)
    out_f32 = resblock(x2d, wt_f32, b_f32)
    jax.block_until_ready(out_f32)
    assert jnp.allclose(out_f32, ref_r, atol=1e-5, rtol=1e-5), "mismatch (f32 W)"

    # Ragged / multi-tile case (exercises padding + weight-resident ordering).
    M2, H2 = 40, 300
    x2 = jax.random.normal(k_x2, (M2, H2), dtype=jnp.float32)
    w2 = 0.05 * jax.random.normal(k_w2, (H2, H2), dtype=jnp.float32)
    b2 = jax.random.uniform(k_b2, (H2,), jnp.float32, minval=-0.1, maxval=0.1)
    ref2 = _ref(x2, w2, b2)

    wt2_bf, b2_bf = prepare_resblock_params(w2, b2)
    out2_bf = resblock(x2, wt2_bf, b2_bf)
    jax.block_until_ready(out2_bf)
    assert jnp.allclose(out2_bf, ref2, atol=2e-2, rtol=2e-2), "mismatch (ragged bf16)"

    wt2_f, b2_f = prepare_resblock_params(w2, b2, compute_dtype=jnp.float32)
    out2_f = resblock(x2, wt2_f, b2_f)
    jax.block_until_ready(out2_f)
    assert jnp.allclose(out2_f, ref2, atol=1e-4, rtol=1e-4), "mismatch (ragged f32)"

    print("KERNEL_OK")
</pallas_src>

<mosaic_0001>
module attributes {stable_mosaic.version = 11 : i64} {
  func.func @resblock_kernel(%arg0: i32, %arg1: i32, %arg2: memref<16x128xf32, #tpu.memory_space<vmem>>, %arg3: memref<128x128xbf16, #tpu.memory_space<vmem>>, %arg4: memref<1x128xf32, #tpu.memory_space<vmem>>, %arg5: memref<16x128xf32, #tpu.memory_space<vmem>>, %arg6: memref<16x128xf32, #tpu.memory_space<vmem>>) attributes {dimension_semantics = [#tpu.dimension_semantics<parallel>, #tpu.dimension_semantics<parallel>], iteration_bounds = array<i64: 1, 1>, scalar_prefetch = 0 : i64, scratch_operands = 0 : i64, tpu.core_type = #tpu.core_type<tc>, window_params = [{transform_indices = @transform_0, window_bounds = array<i64: 16, 128>}, {transform_indices = @transform_1, window_bounds = array<i64: 128, 128>}, {transform_indices = @transform_2, window_bounds = array<i64: 1, 128>}, {transform_indices = @transform_3, window_bounds = array<i64: 16, 128>}, {transform_indices = @transform_4, window_bounds = array<i64: 16, 128>}]} {
    %c0 = arith.constant 0 : index
    %c0_0 = arith.constant 0 : index
    %0 = vector.load %arg2[%c0, %c0_0] : memref<16x128xf32, #tpu.memory_space<vmem>>, vector<16x128xf32>
    %1 = arith.truncf %0 : vector<16x128xf32> to vector<16x128xbf16>
    %c0_1 = arith.constant 0 : index
    %c0_2 = arith.constant 0 : index
    %2 = vector.load %arg3[%c0_1, %c0_2] : memref<128x128xbf16, #tpu.memory_space<vmem>>, vector<128x128xbf16>
    %cst = arith.constant dense<0.000000e+00> : vector<16x128xf32>
    %3 = tpu.matmul %1, %2, %cst {dimension_numbers = #tpu.dot_dimension_numbers<[1], [0], [0], [1], [0, 0, 1, 1], [], []>} : vector<16x128xbf16>, vector<128x128xbf16>, vector<16x128xf32> -> vector<16x128xf32>
    %c0_3 = arith.constant 0 : index
    %c0_4 = arith.constant 0 : index
    %4 = vector.load %arg4[%c0_3, %c0_4] : memref<1x128xf32, #tpu.memory_space<vmem>>, vector<1x128xf32>
    %5 = vector.broadcast %4 : vector<1x128xf32> to vector<16x128xf32>
    %6 = arith.addf %3, %5 : vector<16x128xf32>
    %cst_5 = arith.constant 0.000000e+00 : f32
    %7 = vector.broadcast %cst_5 : f32 to vector<16x128xf32>
    %8 = arith.subf %7, %6 : vector<16x128xf32>
    %9 = math.exp %8 : vector<16x128xf32>
    %cst_6 = arith.constant 1.000000e+00 : f32
    %10 = vector.broadcast %cst_6 : f32 to vector<16x128xf32>
    %11 = arith.addf %10, %9 : vector<16x128xf32>
    %12 = tpu.reciprocal %11 : vector<16x128xf32> -> vector<16x128xf32>
    %13 = arith.mulf %6, %12 : vector<16x128xf32>
    %c0_7 = arith.constant 0 : index
    %c0_8 = arith.constant 0 : index
    %14 = vector.load %arg5[%c0_7, %c0_8] : memref<16x128xf32, #tpu.memory_space<vmem>>, vector<16x128xf32>
    %15 = arith.addf %14, %13 : vector<16x128xf32>
    %c0_9 = arith.constant 0 : index
    %c0_10 = arith.constant 0 : index
    %16 = vector.load %arg6[%c0_9, %c0_10] : memref<16x128xf32, #tpu.memory_space<vmem>>, vector<16x128xf32>
    tpu.vector_store %arg6[%c0_9, %c0_10], %15 {strides = array<i32>} : memref<16x128xf32, #tpu.memory_space<vmem>>, vector<16x128xf32>,
    return
  }
  func.func @transform_0(%arg0: i32, %arg1: i32) -> (i32, i32) {
    %c0_i32 = arith.constant 0 : i32
    %c0_i32_0 = arith.constant 0 : i32
    return %arg0, %c0_i32 : i32, i32
  }
  func.func @transform_1(%arg0: i32, %arg1: i32) -> (i32, i32) {
    %c0_i32 = arith.constant 0 : i32
    %c0_i32_0 = arith.constant 0 : i32
    return %c0_i32, %arg1 : i32, i32
  }
  func.func @transform_2(%arg0: i32, %arg1: i32) -> (i32, i32) {
    %c0_i32 = arith.constant 0 : i32
    %c0_i32_0 = arith.constant 0 : i32
    return %c0_i32, %arg1 : i32, i32
  }
  func.func @transform_3(%arg0: i32, %arg1: i32) -> (i32, i32) {
    %c0_i32 = arith.constant 0 : i32
    return %arg0, %arg1 : i32, i32
  }
  func.func @transform_4(%arg0: i32, %arg1: i32) -> (i32, i32) {
    %c0_i32 = arith.constant 0 : i32
    return %arg0, %arg1 : i32, i32
  }
}

</mosaic_0001>

<llo_original>
// kernel: tpu_custom_call.1
$region0: #{tpu_custom_call.1}
  #allocation0 [shape = 'u32[]', space=smem, size = 0x4, offset = 0x4, fixed_abs, tag = 'smem constant byte address 0x4 - core index']
  #allocation1 [shape = 'u32[72,128]{1,0:T(1,128)}', space=vmem, size = 0x9000, scoped, tag = 'internal scratch']
  %s0 = inlined_call_operand.hbm [shape: f32[16,128], index: 0, kind: input, shape index: {}]
  %s1 = inlined_call_operand.hbm [shape: bf16[128,128], index: 1, kind: input, shape index: {}]
  %s2 = inlined_call_operand.vmem [shape: f32[1,128], index: 2, kind: input, shape index: {}]
  %s3 = inlined_call_operand.hbm [shape: f32[16,128], index: 3, kind: input, shape index: {}]
  %s4 = inlined_call_operand.hbm [shape: f32[16,128], index: 4, kind: output, shape index: {}]
  %s5 = sld [smem:[#allocation0]]
  $region38: #{tpu_custom_call.1} parent=0
    _
  %s7 = ssub.s32 1, %s5
  %s8 = scalar_select 0, %s7, %s5
  $region1: #{tpu_custom_call.1} parent=0
    #allocation2 [shape = 'u8[8192]{0}', space=vmem, size = 0x2000, scoped, tag = 'input window, operand 0, single buffered']
    #allocation3 [shape = 's32[1]{0}', space=sflag, size = 0x4, scoped, tag = 'scoped memory for tpu_custom_call.1']
    #allocation4 [shape = 's32[1]{0}', space=sflag, size = 0x4, scoped, tag = 'scoped memory for tpu_custom_call.1']
    #allocation5 [shape = 'u8[32768]{0}', space=vmem, size = 0x8000, scoped, tag = 'input window, operand 1, single buffered']
    #allocation6 [shape = 's32[1]{0}', space=sflag, size = 0x4, scoped, tag = 'scoped memory for tpu_custom_call.1']
    #allocation7 [shape = 'u8[8192]{0}', space=vmem, size = 0x2000, scoped, tag = 'input window, operand 3, single buffered']
    #allocation8 [shape = 'u8[8192]{0}', space=vmem, size = 0x2000, scoped, tag = 'output window, operand 0, single buffered']
    %9 = vsyncpa [#allocation3], 0
    %10 = vsyncpa [#allocation6], 0
    %11 = vsyncpa [#allocation4], 0
    // Predicated region
    $region2: #{tpu_custom_call.1} parent=1 // pred_check
      _
    $region3: #{tpu_custom_call.1} parent=1 // pred_check_branch
      %13 = sbr.rel (0) target = $region5
    $region4: #{tpu_custom_call.1} parent=1 // pred_region
      %15 = vsyncadd [#allocation3], 0
      %s16 = sshll.u32 %s0, 4
      %s17 = int_to_ptr.hbm [resolvable:$true] %s16
      %s18 = sshll.u32 [#allocation2], 4
      %s19 = int_to_ptr.vmem [resolvable:$true] %s18
      %24 = dma.hbm_to_vmem [thread:$0]  %s17, 256, %s19, [#allocation3], 128, 128, 8
    $region5: #{tpu_custom_call.1} parent=1 // pred_fallthru
      _
    // Predicated region
    $region6: #{tpu_custom_call.1} parent=1 // pred_check
      _
    $region7: #{tpu_custom_call.1} parent=1 // pred_check_branch
      %26 = sbr.rel (0) target = $region9
    $region8: #{tpu_custom_call.1} parent=1 // pred_region
      %28 = vsyncadd [#allocation6], 0
      %s29 = sshll.u32 %s1, 4
      %s30 = int_to_ptr.hbm [resolvable:$true] %s29
      %s31 = sshll.u32 [#allocation5], 4
      %s32 = int_to_ptr.vmem [resolvable:$true] %s31
      %37 = dma.hbm_to_vmem [thread:$0]  %s30, 1024, %s32, [#allocation6], 64, 64, 4
    $region9: #{tpu_custom_call.1} parent=1 // pred_fallthru
      _
    // Predicated region
    $region10: #{tpu_custom_call.1} parent=1 // pred_check
      _
    $region11: #{tpu_custom_call.1} parent=1 // pred_check_branch
      %39 = sbr.rel (0) target = $region13
    $region12: #{tpu_custom_call.1} parent=1 // pred_region
      _
    $region13: #{tpu_custom_call.1} parent=1 // pred_fallthru
      _
    // Predicated region
    $region14: #{tpu_custom_call.1} parent=1 // pred_check
      _
    $region15: #{tpu_custom_call.1} parent=1 // pred_check_branch
      %41 = sbr.rel (0) target = $region17
    $region16: #{tpu_custom_call.1} parent=1 // pred_region
      %43 = vsyncadd [#allocation6], 0
      %s44 = sshll.u32 %s3, 4
      %s45 = int_to_ptr.hbm [resolvable:$true] %s44
      %s46 = sshll.u32 [#allocation7], 4
      %s47 = int_to_ptr.vmem [resolvable:$true] %s46
      %52 = dma.hbm_to_vmem [thread:$0]  %s45, 256, %s47, [#allocation6], 128, 128, 8
    $region17: #{tpu_custom_call.1} parent=1 // pred_fallthru
      _
    // Predicated region
    $region18: #{tpu_custom_call.1} parent=1 // pred_check
      _
    $region19: #{tpu_custom_call.1} parent=1 // pred_check_branch
      %54 = sbr.rel (0) target = $region21
    $region20: #{tpu_custom_call.1} parent=1 // pred_region
      %56 = dma.done [#allocation3], 256
    $region21: #{tpu_custom_call.1} parent=1 // pred_fallthru
      _
    // Predicated region
    $region22: #{tpu_custom_call.1} parent=1 // pred_check
      _
    $region23: #{tpu_custom_call.1} parent=1 // pred_check_branch
      %58 = sbr.rel (0) target = $region25
    $region24: #{tpu_custom_call.1} parent=1 // pred_region
      %60 = dma.done [#allocation6], 1024
    $region25: #{tpu_custom_call.1} parent=1 // pred_fallthru
      _
    // Predicated region
    $region26: #{tpu_custom_call.1} parent=1 // pred_check
      _
    $region27: #{tpu_custom_call.1} parent=1 // pred_check_branch
      %62 = sbr.rel (0) target = $region29
    $region28: #{tpu_custom_call.1} parent=1 // pred_region
      %64 = dma.done [#allocation6], 256
    $region29: #{tpu_custom_call.1} parent=1 // pred_fallthru
      _
    %v65 = vld [vmem:[#allocation2] sm:$0xff]
    %v66 = vld [vmem:[#allocation2 + $0x8] sm:$0xff]
    %v67 = vpack.c.bf16 %v66, %v65
    %v68 = vld [vmem:[#allocation5] sm:$0xf]
    %v69 = vld [vmem:[#allocation5 + $0x4] sm:$0xf]
    %v70 = vld [vmem:[#allocation5 + $0x8] sm:$0xf]
    %v71 = vld [vmem:[#allocation5 + $0xc] sm:$0xf]
    %v72 = vld [vmem:[#allocation5 + $0x10] sm:$0xf]
    %v73 = vld [vmem:[#allocation5 + $0x14] sm:$0xf]
    %v74 = vld [vmem:[#allocation5 + $0x18] sm:$0xf]
    %v75 = vld [vmem:[#allocation5 + $0x1c] sm:$0xf]
    %v76 = vld [vmem:[#allocation5 + $0x20] sm:$0xf]
    %v77 = vld [vmem:[#allocation5 + $0x24] sm:$0xf]
    %v78 = vld [vmem:[#allocation5 + $0x28] sm:$0xf]
    %v79 = vld [vmem:[#allocation5 + $0x2c] sm:$0xf]
    %v80 = vld [vmem:[#allocation5 + $0x30] sm:$0xf]
    %v81 = vld [vmem:[#allocation5 + $0x34] sm:$0xf]
    %v82 = vld [vmem:[#allocation5 + $0x38] sm:$0xf]
    %v83 = vld [vmem:[#allocation5 + $0x3c] sm:$0xf]
    %v84 = vld [vmem:[%s2] sm:$0x1]
    %v86 = vperm.slane %v84, 0
    %v104 = vunpack.c.l.b16 %v68
    %v105 = vunpack.c.l.b16 %v69
    %v106 = vunpack.c.l.b16 %v70
    %v107 = vunpack.c.l.b16 %v71
    %v108 = vunpack.c.l.b16 %v72
    %v109 = vunpack.c.l.b16 %v73
    %v110 = vunpack.c.l.b16 %v74
    %v111 = vunpack.c.l.b16 %v75
    %v112 = vunpack.c.l.b16 %v76
    %v113 = vunpack.c.l.b16 %v77
    %v114 = vunpack.c.l.b16 %v78
    %v115 = vunpack.c.l.b16 %v79
    %v116 = vunpack.c.l.b16 %v80
    %v117 = vunpack.c.l.b16 %v81
    %v118 = vunpack.c.l.b16 %v82
    %v119 = vunpack.c.l.b16 %v83
    %v120 = vpack.c.b16 %v105, %v104
    %v121 = vpack.c.b16 %v107, %v106
    %v122 = vpack.c.b16 %v109, %v108
    %v123 = vpack.c.b16 %v111, %v110
    %v124 = vpack.c.b16 %v113, %v112
    %v125 = vpack.c.b16 %v115, %v114
    %v126 = vpack.c.b16 %v117, %v116
    %v127 = vpack.c.b16 %v119, %v118
    %136 = vmatpush.bf16.msra.mxu0 %v127
    %137 = vmatpush.bf16.msra.mxu0 %v126
    %138 = vmatpush.bf16.msra.mxu0 %v125
    %139 = vmatpush.bf16.msra.mxu0 %v124
    %140 = vmatpush.bf16.msra.mxu0 %v123
    %141 = vmatpush.bf16.msra.mxu0 %v122
    %142 = vmatpush.bf16.msra.mxu0 %v121
    %143 = vmatpush.bf16.msra.mxu0 %v120
    %144 = vmatmul.bf16.gmra.mxu0 %v67
    %v145 = vpop.f32.mrf.mxu0
    %v146 = vadd.f32 %v86, %v145
    %v147 = vpop.f32.mrf.mxu0
    %v148 = vadd.f32 %v86, %v147
    %149 = vdwg.mxu0
    %v150 = vsub.f32 0.0, %v146
    %v151 = vsub.f32 0.0, %v148
    %v152 = vmul.f32 %v150, 1.442695
    %v153 = vpow.pop %v152
    %v154 = vmul.f32 %v151, 1.442695
    %v155 = vpow.pop %v154
    %v156 = vadd.f32 %v153, 1.0
    %v157 = vadd.f32 %v155, 1.0
    %v158 = vrcp.pop %v156
    %v159 = vmul.f32 %v156, %v158
    %v160 = vsub.f32 1.0, %v159
    %v161 = vmul.f32 %v158, %v160
    %v162 = vadd.f32 %v158, %v161
    %vm163 = vweird.f32 %v156
    %vm164 = vweird.f32 %v158
    %vm165 = vmor %vm163, %vm164
    %v166 = vsel %vm165, %v158, %v162
    %v167 = vand.u32 2147483647, %v156
    %vm168 = vcmp.eq.f32.partialorder %v167, 8.507059e+37
    %v169 = vand.u32 %v156, 2147483648
    %v170 = vor.u32 1.1754944e-38, %v169
    %v171 = vsel %vm168, %v170, %v166
    %v172 = vrcp.pop %v157
    %v173 = vmul.f32 %v157, %v172
    %v174 = vsub.f32 1.0, %v173
    %v175 = vmul.f32 %v172, %v174
    %v176 = vadd.f32 %v172, %v175
    %vm177 = vweird.f32 %v157
    %vm178 = vweird.f32 %v172
    %vm179 = vmor %vm177, %vm178
    %v180 = vsel %vm179, %v172, %v176
    %v181 = vand.u32 2147483647, %v157
    %vm182 = vcmp.eq.f32.partialorder %v181, 8.507059e+37
    %v183 = vand.u32 %v157, 2147483648
    %v184 = vor.u32 1.1754944e-38, %v183
    %v185 = vsel %vm182, %v184, %v180
    %v186 = vmul.f32 %v146, %v171
    %v187 = vmul.f32 %v148, %v185
    %v188 = vld [vmem:[#allocation7] sm:$0xff]
    %v189 = vld [vmem:[#allocation7 + $0x8] sm:$0xff]
    %v190 = vadd.f32 %v188, %v186
    %v191 = vadd.f32 %v189, %v187
    %192 = vst [vmem:[#allocation8] sm:$0xff] %v190
    %193 = vst [vmem:[#allocation8 + $0x8] sm:$0xff] %v191
    // Predicated region
    $region30: #{tpu_custom_call.1} parent=1 // pred_check
      _
    $region31: #{tpu_custom_call.1} parent=1 // pred_check_branch
      %195 = sbr.rel (0) target = $region33
    $region32: #{tpu_custom_call.1} parent=1 // pred_region
      %197 = vsyncadd [#allocation4], 0
      %s198 = sshll.u32 [#allocation8], 4
      %s199 = int_to_ptr.vmem [resolvable:$true] %s198
      %s200 = sshll.u32 %s4, 4
      %s201 = int_to_ptr.hbm [resolvable:$true] %s200
      %206 = dma.vmem_to_hbm [thread:$0]  %s199, 256, %s201, [#allocation4], 128, 128, 8
    $region33: #{tpu_custom_call.1} parent=1 // pred_fallthru
      _
    // Predicated region
    $region34: #{tpu_custom_call.1} parent=1 // pred_check
      _
    $region35: #{tpu_custom_call.1} parent=1 // pred_check_branch
      %208 = sbr.rel (0) target = $region37
    $region36: #{tpu_custom_call.1} parent=1 // pred_region
      %210 = dma.done [#allocation4], 256
    $region37: #{tpu_custom_call.1} parent=1 // pred_fallthru
      _
    %211 = vsyncpa [#allocation3], 1
    %212 = vsyncpa [#allocation6], 1
    %213 = vsyncpa [#allocation4], 1

</llo_original>
